<compile_context>
chip_gen: v7x
topology: tpu7x:2x2x1
jax: 0.10.0
libtpu: 0.0.40
codegen_flags: <defaults>
</compile_context>

<pallas_src>
import functools

import jax
import jax.numpy as jnp
from jax.experimental import pallas as pl
from jax.experimental.pallas import tpu as pltpu


def shrinkage_se_kernel(x_ref, w1t_ref, b1_ref, w2t_ref, b2_ref, o_ref, *, inv_len):
    x = x_ref[...]                                                    # (tb, C, L)

    # Global average pool over the full (true) length -> per-(batch, channel).
    avg = jnp.sum(jnp.abs(x), axis=-1, dtype=jnp.float32) * inv_len   # (tb, C)

    # fc: Linear -> ReLU -> Linear -> Sigmoid (weights pre-transposed).
    h = jnp.dot(avg, w1t_ref[...], preferred_element_type=jnp.float32)
    h = jnp.maximum(h + b1_ref[...], 0.0)                             # (tb, C)
    s = jnp.dot(h, w2t_ref[...], preferred_element_type=jnp.float32)
    s = jax.nn.sigmoid(s + b2_ref[...])                               # (tb, C)

    # Threshold per (batch, channel).  Cast to x.dtype so the big elementwise
    # pass stays in the input dtype (bf16 inputs stay on the bf16 VALU path).
    thr = (avg * s).astype(x.dtype)[:, :, None]                       # (tb, C, 1), >= 0

    # Soft threshold: x - clip(x, -thr, thr) == sign(x) * max(|x| - thr, 0).
    o_ref[...] = (x - jnp.clip(x, -thr, thr)).astype(o_ref.dtype)


def _tpu_generation_params():
    """Best-effort (vmem_capacity_bytes, num_tensorcores_per_chip)."""
    vmem = 128 << 20
    try:
        vmem = int(getattr(pltpu.get_tpu_info(), "vmem_capacity_bytes", vmem))
    except Exception:
        pass
    kind = ""
    try:
        kind = jax.devices()[0].device_kind.lower()
    except Exception:
        pass
    # v7x exposes 64 MiB per TensorCore and has 2 TCs; v5e/v6e have 128 MiB, 1 TC.
    num_tc = 2 if (vmem <= (64 << 20) or "7" in kind) else 1
    if num_tc == 2:
        vmem = min(vmem, 64 << 20)
    return vmem, num_tc


def _choose_block_batch(B, C, L, itemsize, vmem_capacity, num_tc):
    """Batch rows per grid step.

    Big enough to amortize the ~0.35 us/step pipeline overhead (target ~4 MiB
    of x per DMA), small enough that the 2x-buffered in + out blocks fit a
    generation-appropriate VMEM budget, and (on 2-TC chips only) sized so the
    grid has an even, balanced number of steps across both TensorCores."""
    row_bytes = max(1, C * L * itemsize)

    if vmem_capacity <= (64 << 20):
        budget = 40 << 20            # v7x: keep 4*block well under the 48 MiB limit
    else:
        budget = 96 << 20            # v5e/v6e: use the 128 MiB VMEM generously
    target_dma_bytes = 4 << 20       # ~4 MiB of x per grid step

    tb = min(B,
             max(1, budget // (4 * row_bytes)),          # 2x-buffered in + out
             max(1, target_dma_bytes // row_bytes))

    if num_tc > 1 and B > 1:
        # Keep both TensorCores busy and balanced: at least num_tc steps, and
        # prefer a step count that is a multiple of num_tc.
        tb = min(tb, pl.cdiv(B, num_tc))
        while tb > 1 and pl.cdiv(B, tb) % num_tc != 0:
            tb -= 1
    return max(1, tb)


def shrinkage_se(x, w1, b1, w2, b2, *, block_batch=None):
    """x: (B, C, L).  w1, w2: (C, C) in PyTorch (out, in) layout.  b1, b2: (C,)."""
    B, C, L = x.shape
    itemsize = jnp.dtype(x.dtype).itemsize
    vmem_capacity, num_tc = _tpu_generation_params()

    tb = block_batch if block_batch is not None else _choose_block_batch(
        B, C, L, itemsize, vmem_capacity, num_tc)
    tb = max(1, min(int(tb), B))
    num_steps = pl.cdiv(B, tb)       # ragged final block is masked by Pallas

    # Pre-transpose weights (glue) so the kernel does plain row-major matmuls.
    w1t = jnp.asarray(w1).T                                   # (C_in, C_out)
    w2t = jnp.asarray(w2).T
    b1_2d = jnp.asarray(b1).reshape(1, C)
    b2_2d = jnp.asarray(b2).reshape(1, C)

    # VMEM accounting: double-buffered in/out x blocks + single-buffered
    # weights + fixed headroom for Mosaic internal scratch.
    w_itemsize = jnp.dtype(w1t.dtype).itemsize
    block_bytes = tb * C * L * itemsize
    weight_bytes = 2 * C * C * w_itemsize + 2 * C * w_itemsize
    needed = 4 * block_bytes + weight_bytes + (2 << 20)
    hard_cap = (48 << 20) if vmem_capacity <= (64 << 20) else min(vmem_capacity, 100 << 20)
    vmem_limit = int(min(hard_cap, max(32 << 20, needed)))

    kernel = functools.partial(shrinkage_se_kernel, inv_len=1.0 / L)

    def const_spec(shape):
        # Constant across the grid -> no re-DMA and no double buffer.
        return pl.BlockSpec(shape, lambda i: (0, 0), pipeline_mode=pl.Buffered(1))

    out = pl.pallas_call(
        kernel,
        out_shape=jax.ShapeDtypeStruct((B, C, L), x.dtype),
        grid_spec=pltpu.PrefetchScalarGridSpec(
            num_scalar_prefetch=0,
            grid=(num_steps,),
            in_specs=[
                pl.BlockSpec((tb, C, L), lambda i: (i, 0, 0)),
                const_spec((C, C)),      # w1^T
                const_spec((1, C)),      # b1
                const_spec((C, C)),      # w2^T
                const_spec((1, C)),      # b2
            ],
            out_specs=pl.BlockSpec((tb, C, L), lambda i: (i, 0, 0)),
        ),
        compiler_params=pltpu.CompilerParams(
            dimension_semantics=("parallel",),
            vmem_limit_bytes=vmem_limit,
        ),
    )(x, w1t, b1_2d, w2t, b2_2d)

    return out


def shrinkage_se_ref(x, w1, b1, w2, b2):
    """Pure-JAX reference with identical semantics (for verification)."""
    abs_x = jnp.abs(x)
    avg = jnp.mean(abs_x, axis=-1)                            # (B, C)
    h = jnp.maximum(avg @ w1.T + b1, 0.0)
    s = jax.nn.sigmoid(h @ w2.T + b2)
    thr = (avg * s)[:, :, None]
    n_sub = jnp.maximum(abs_x - thr, 0.0)
    return jnp.sign(x) * n_sub


if __name__ == "__main__":
    # L deliberately NOT a multiple of 128: exercises the unpadded, full-extent
    # last-dim path (no wrapper pad/slice).
    B, C, L = 4, 64, 96
    key = jax.random.PRNGKey(0)
    kx, k1, k2, k3, k4 = jax.random.split(key, 5)

    x = jax.random.normal(kx, (B, C, L), dtype=jnp.float32)

    # Deterministic init mimicking nn.Linear default (uniform +-1/sqrt(fan_in)).
    bound = 1.0 / jnp.sqrt(jnp.float32(C))
    w1 = jax.random.uniform(k1, (C, C), jnp.float32, -bound, bound)   # fc[0].weight (out, in)
    b1 = jax.random.uniform(k2, (C,), jnp.float32, -bound, bound)     # fc[0].bias
    w2 = jax.random.uniform(k3, (C, C), jnp.float32, -bound, bound)   # fc[2].weight
    b2 = jax.random.uniform(k4, (C,), jnp.float32, -bound, bound)     # fc[2].bias

    out = shrinkage_se(x, w1, b1, w2, b2)
    out = jax.block_until_ready(out)

    ref = shrinkage_se_ref(x, w1, b1, w2, b2)
    assert out.shape == (B, C, L)
    assert jnp.allclose(out, ref, atol=1e-5, rtol=1e-5), "mismatch vs reference"

    print("KERNEL_OK")
</pallas_src>

<mosaic_0001>
module attributes {stable_mosaic.version = 11 : i64} {
  func.func @shrinkage_se_kernel(%arg0: i32, %arg1: memref<4x64x96xf32, #tpu.memory_space<vmem>>, %arg2: memref<64x64xf32, #tpu.memory_space<vmem>>, %arg3: memref<1x64xf32, #tpu.memory_space<vmem>>, %arg4: memref<64x64xf32, #tpu.memory_space<vmem>>, %arg5: memref<1x64xf32, #tpu.memory_space<vmem>>, %arg6: memref<4x64x96xf32, #tpu.memory_space<vmem>>) attributes {dimension_semantics = [#tpu.dimension_semantics<parallel>], iteration_bounds = array<i64: 1>, scalar_prefetch = 0 : i64, scratch_operands = 0 : i64, tpu.core_type = #tpu.core_type<tc>, window_params = [{transform_indices = @transform_0, window_bounds = array<i64: 4, 64, 96>}, {pipeline_mode = #tpu.pipeline_mode<synchronous>, transform_indices = @transform_1, window_bounds = array<i64: 64, 64>}, {pipeline_mode = #tpu.pipeline_mode<synchronous>, transform_indices = @transform_2, window_bounds = array<i64: 1, 64>}, {pipeline_mode = #tpu.pipeline_mode<synchronous>, transform_indices = @transform_3, window_bounds = array<i64: 64, 64>}, {pipeline_mode = #tpu.pipeline_mode<synchronous>, transform_indices = @transform_4, window_bounds = array<i64: 1, 64>}, {transform_indices = @transform_5, window_bounds = array<i64: 4, 64, 96>}]} {
    %c0 = arith.constant 0 : index
    %c0_0 = arith.constant 0 : index
    %c0_1 = arith.constant 0 : index
    %0 = vector.load %arg1[%c0, %c0_0, %c0_1] : memref<4x64x96xf32, #tpu.memory_space<vmem>>, vector<4x64x96xf32>
    %1 = math.absf %0 : vector<4x64x96xf32>
    %cst = arith.constant dense<0.000000e+00> : vector<4x64xf32>
    %2 = vector.multi_reduction <add>, %1, %cst [2] : vector<4x64x96xf32> to vector<4x64xf32>
    %cst_2 = arith.constant 0.010416667 : f32
    %3 = vector.broadcast %cst_2 : f32 to vector<4x64xf32>
    %4 = arith.mulf %2, %3 : vector<4x64xf32>
    %c0_3 = arith.constant 0 : index
    %c0_4 = arith.constant 0 : index
    %5 = vector.load %arg2[%c0_3, %c0_4] : memref<64x64xf32, #tpu.memory_space<vmem>>, vector<64x64xf32>
    %cst_5 = arith.constant dense<0.000000e+00> : vector<4x64xf32>
    %6 = tpu.matmul %4, %5, %cst_5 {dimension_numbers = #tpu.dot_dimension_numbers<[1], [0], [0], [1], [0, 0, 1, 1], [], []>} : vector<4x64xf32>, vector<64x64xf32>, vector<4x64xf32> -> vector<4x64xf32>
    %c0_6 = arith.constant 0 : index
    %c0_7 = arith.constant 0 : index
    %7 = vector.load %arg3[%c0_6, %c0_7] : memref<1x64xf32, #tpu.memory_space<vmem>>, vector<1x64xf32>
    %8 = vector.broadcast %7 : vector<1x64xf32> to vector<4x64xf32>
    %9 = arith.addf %6, %8 : vector<4x64xf32>
    %cst_8 = arith.constant 0.000000e+00 : f32
    %10 = vector.broadcast %cst_8 : f32 to vector<4x64xf32>
    %11 = arith.maximumf %9, %10 : vector<4x64xf32>
    %c0_9 = arith.constant 0 : index
    %c0_10 = arith.constant 0 : index
    %12 = vector.load %arg4[%c0_9, %c0_10] : memref<64x64xf32, #tpu.memory_space<vmem>>, vector<64x64xf32>
    %cst_11 = arith.constant dense<0.000000e+00> : vector<4x64xf32>
    %13 = tpu.matmul %11, %12, %cst_11 {dimension_numbers = #tpu.dot_dimension_numbers<[1], [0], [0], [1], [0, 0, 1, 1], [], []>} : vector<4x64xf32>, vector<64x64xf32>, vector<4x64xf32> -> vector<4x64xf32>
    %c0_12 = arith.constant 0 : index
    %c0_13 = arith.constant 0 : index
    %14 = vector.load %arg5[%c0_12, %c0_13] : memref<1x64xf32, #tpu.memory_space<vmem>>, vector<1x64xf32>
    %15 = vector.broadcast %14 : vector<1x64xf32> to vector<4x64xf32>
    %16 = arith.addf %13, %15 : vector<4x64xf32>
    %17 = arith.negf %16 : vector<4x64xf32>
    %18 = math.exp %17 : vector<4x64xf32>
    %cst_14 = arith.constant 1.000000e+00 : f32
    %19 = vector.broadcast %cst_14 : f32 to vector<4x64xf32>
    %20 = arith.addf %19, %18 : vector<4x64xf32>
    %21 = arith.divf %19, %20 : vector<4x64xf32>
    %22 = arith.mulf %4, %21 : vector<4x64xf32>
    %23 = vector.shape_cast %22 : vector<4x64xf32> to vector<4x64x1xf32>
    %cst_15 = arith.constant 0.000000e+00 : f32
    %24 = vector.broadcast %cst_15 : f32 to vector<4x64x1xf32>
    %25 = arith.subf %24, %23 : vector<4x64x1xf32>
    %26 = vector.broadcast %25 : vector<4x64x1xf32> to vector<4x64x96xf32>
    %27 = arith.maximumf %26, %0 : vector<4x64x96xf32>
    %28 = vector.broadcast %23 : vector<4x64x1xf32> to vector<4x64x96xf32>
    %29 = arith.minimumf %28, %27 : vector<4x64x96xf32>
    %30 = arith.subf %0, %29 : vector<4x64x96xf32>
    %c0_16 = arith.constant 0 : index
    %c0_17 = arith.constant 0 : index
    %c0_18 = arith.constant 0 : index
    %31 = vector.load %arg6[%c0_16, %c0_17, %c0_18] : memref<4x64x96xf32, #tpu.memory_space<vmem>>, vector<4x64x96xf32>
    tpu.vector_store %arg6[%c0_16, %c0_17, %c0_18], %30 {strides = array<i32>} : memref<4x64x96xf32, #tpu.memory_space<vmem>>, vector<4x64x96xf32>,
    return
  }
  func.func @transform_0(%arg0: i32) -> (i32, i32, i32) {
    %c0_i32 = arith.constant 0 : i32
    %c0_i32_0 = arith.constant 0 : i32
    %c0_i32_1 = arith.constant 0 : i32
    return %arg0, %c0_i32, %c0_i32_0 : i32, i32, i32
  }
  func.func @transform_1(%arg0: i32) -> (i32, i32) {
    %c0_i32 = arith.constant 0 : i32
    %c0_i32_0 = arith.constant 0 : i32
    %c0_i32_1 = arith.constant 0 : i32
    return %c0_i32, %c0_i32_0 : i32, i32
  }
  func.func @transform_2(%arg0: i32) -> (i32, i32) {
    %c0_i32 = arith.constant 0 : i32
    %c0_i32_0 = arith.constant 0 : i32
    %c0_i32_1 = arith.constant 0 : i32
    return %c0_i32, %c0_i32_0 : i32, i32
  }
  func.func @transform_3(%arg0: i32) -> (i32, i32) {
    %c0_i32 = arith.constant 0 : i32
    %c0_i32_0 = arith.constant 0 : i32
    %c0_i32_1 = arith.constant 0 : i32
    return %c0_i32, %c0_i32_0 : i32, i32
  }
  func.func @transform_4(%arg0: i32) -> (i32, i32) {
    %c0_i32 = arith.constant 0 : i32
    %c0_i32_0 = arith.constant 0 : i32
    %c0_i32_1 = arith.constant 0 : i32
    return %c0_i32, %c0_i32_0 : i32, i32
  }
  func.func @transform_5(%arg0: i32) -> (i32, i32, i32) {
    %c0_i32 = arith.constant 0 : i32
    %c0_i32_0 = arith.constant 0 : i32
    %c0_i32_1 = arith.constant 0 : i32
    return %arg0, %c0_i32, %c0_i32_0 : i32, i32, i32
  }
}

</mosaic_0001>

<llo_original>
// kernel: tpu_custom_call.1
$region0: #{tpu_custom_call.1}
  #allocation0 [shape = 'u32[]', space=smem, size = 0x4, offset = 0x4, fixed_abs, tag = 'smem constant byte address 0x4 - core index']
  #allocation1 [shape = 'u32[144,128]{1,0:T(1,128)}', space=vmem, size = 0x12000, scoped, tag = 'internal scratch']
  %s0 = inlined_call_operand.hbm [shape: f32[4,64,96], index: 0, kind: input, shape index: {}]
  %s1 = inlined_call_operand.hbm [shape: f32[64,64], index: 1, kind: input, shape index: {}]
  %s2 = inlined_call_operand.vmem [shape: f32[1,64], index: 2, kind: input, shape index: {}]
  %s3 = inlined_call_operand.hbm [shape: f32[64,64], index: 3, kind: input, shape index: {}]
  %s4 = inlined_call_operand.vmem [shape: f32[1,64], index: 4, kind: input, shape index: {}]
  %s5 = inlined_call_operand.hbm [shape: f32[4,64,96], index: 5, kind: output, shape index: {}]
  %s6 = sld [smem:[#allocation0]]
  $region42: #{tpu_custom_call.1} parent=0
    _
  %s8 = ssub.s32 1, %s6
  %s9 = scalar_select 0, %s8, %s6
  $region1: #{tpu_custom_call.1} parent=0
    #allocation2 [shape = 'u8[131072]{0}', space=vmem, size = 0x20000, scoped, tag = 'input window, operand 0, single buffered']
    #allocation3 [shape = 's32[1]{0}', space=sflag, size = 0x4, scoped, tag = 'scoped memory for tpu_custom_call.1']
    #allocation4 [shape = 's32[1]{0}', space=sflag, size = 0x4, scoped, tag = 'scoped memory for tpu_custom_call.1']
    #allocation5 [shape = 'u8[32768]{0}', space=vmem, size = 0x8000, scoped, tag = 'input window, operand 1, single buffered']
    #allocation6 [shape = 's32[1]{0}', space=sflag, size = 0x4, scoped, tag = 'scoped memory for tpu_custom_call.1']
    #allocation7 [shape = 'u8[32768]{0}', space=vmem, size = 0x8000, scoped, tag = 'input window, operand 3, single buffered']
    #allocation8 [shape = 'u8[131072]{0}', space=vmem, size = 0x20000, scoped, tag = 'output window, operand 0, single buffered']
    %10 = vsyncpa [#allocation3], 0
    %11 = vsyncpa [#allocation6], 0
    %12 = vsyncpa [#allocation4], 0
    // Predicated region
    $region2: #{tpu_custom_call.1} parent=1 // pred_check
      _
    $region3: #{tpu_custom_call.1} parent=1 // pred_check_branch
      %14 = sbr.rel (0) target = $region5
    $region4: #{tpu_custom_call.1} parent=1 // pred_region
      %s16 = ssub.s32 4096, 4096
      %17 = vsyncadd [#allocation3], %s16
      %s18 = sshll.u32 [#allocation2], 4
      %s19 = int_to_ptr.vmem [resolvable:$true] %s18
      %24 = dma.hbm_to_vmem [thread:$0]  %s0, 4096, %s19, [#allocation3], 128, 128, 8
    $region5: #{tpu_custom_call.1} parent=1 // pred_fallthru
      _
    // Predicated region
    $region6: #{tpu_custom_call.1} parent=1 // pred_check
      _
    $region7: #{tpu_custom_call.1} parent=1 // pred_check_branch
      %26 = sbr.rel (0) target = $region9
    $region8: #{tpu_custom_call.1} parent=1 // pred_region
      %s28 = ssub.s32 1024, 1024
      %29 = vsyncadd [#allocation6], %s28
      %s30 = sshll.u32 [#allocation5], 4
      %s31 = int_to_ptr.vmem [resolvable:$true] %s30
      %36 = dma.hbm_to_vmem [thread:$0]  %s1, 1024, %s31, [#allocation6], 128, 128, 8
    $region9: #{tpu_custom_call.1} parent=1 // pred_fallthru
      _
    // Predicated region
    $region10: #{tpu_custom_call.1} parent=1 // pred_check
      _
    $region11: #{tpu_custom_call.1} parent=1 // pred_check_branch
      %38 = sbr.rel (0) target = $region13
    $region12: #{tpu_custom_call.1} parent=1 // pred_region
      _
    $region13: #{tpu_custom_call.1} parent=1 // pred_fallthru
      _
    // Predicated region
    $region14: #{tpu_custom_call.1} parent=1 // pred_check
      _
    $region15: #{tpu_custom_call.1} parent=1 // pred_check_branch
      %40 = sbr.rel (0) target = $region17
    $region16: #{tpu_custom_call.1} parent=1 // pred_region
      %s42 = ssub.s32 1024, 1024
      %43 = vsyncadd [#allocation6], %s42
      %s44 = sshll.u32 [#allocation7], 4
      %s45 = int_to_ptr.vmem [resolvable:$true] %s44
      %50 = dma.hbm_to_vmem [thread:$0]  %s3, 1024, %s45, [#allocation6], 128, 128, 8
    $region17: #{tpu_custom_call.1} parent=1 // pred_fallthru
      _
    // Predicated region
    $region18: #{tpu_custom_call.1} parent=1 // pred_check
      _
    $region19: #{tpu_custom_call.1} parent=1 // pred_check_branch
      %52 = sbr.rel (0) target = $region21
    $region20: #{tpu_custom_call.1} parent=1 // pred_region
      _
    $region21: #{tpu_custom_call.1} parent=1 // pred_fallthru
      _
    // Predicated region
    $region22: #{tpu_custom_call.1} parent=1 // pred_check
      _
    $region23: #{tpu_custom_call.1} parent=1 // pred_check_branch
      %54 = sbr.rel (0) target = $region25
    $region24: #{tpu_custom_call.1} parent=1 // pred_region
      %55 = dma.done [#allocation3], 4096
    $region25: #{tpu_custom_call.1} parent=1 // pred_fallthru
      _
    // Predicated region
    $region26: #{tpu_custom_call.1} parent=1 // pred_check
      _
    $region27: #{tpu_custom_call.1} parent=1 // pred_check_branch
      %57 = sbr.rel (0) target = $region29
    $region28: #{tpu_custom_call.1} parent=1 // pred_region
      %58 = dma.done [#allocation6], 1024
    $region29: #{tpu_custom_call.1} parent=1 // pred_fallthru
      _
    // Predicated region
    $region30: #{tpu_custom_call.1} parent=1 // pred_check
      _
    $region31: #{tpu_custom_call.1} parent=1 // pred_check_branch
      %60 = sbr.rel (0) target = $region33
    $region32: #{tpu_custom_call.1} parent=1 // pred_region
      %61 = dma.done [#allocation6], 1024
    $region33: #{tpu_custom_call.1} parent=1 // pred_fallthru
      _
    %v62 = vld [vmem:[#allocation2] sm:$0xff]
    %v63 = vld [vmem:[#allocation2 + $0x8] sm:$0xff]
    %v64 = vld [vmem:[#allocation2 + $0x10] sm:$0xff]
    %v65 = vld [vmem:[#allocation2 + $0x18] sm:$0xff]
    %v66 = vld [vmem:[#allocation2 + $0x20] sm:$0xff]
    %v67 = vld [vmem:[#allocation2 + $0x28] sm:$0xff]
    %v68 = vld [vmem:[#allocation2 + $0x30] sm:$0xff]
    %v69 = vld [vmem:[#allocation2 + $0x38] sm:$0xff]
    %v70 = vld [vmem:[#allocation2 + $0x40] sm:$0xff]
    %v71 = vld [vmem:[#allocation2 + $0x48] sm:$0xff]
    %v72 = vld [vmem:[#allocation2 + $0x50] sm:$0xff]
    %v73 = vld [vmem:[#allocation2 + $0x58] sm:$0xff]
    %v74 = vld [vmem:[#allocation2 + $0x60] sm:$0xff]
    %v75 = vld [vmem:[#allocation2 + $0x68] sm:$0xff]
    %v76 = vld [vmem:[#allocation2 + $0x70] sm:$0xff]
    %v77 = vld [vmem:[#allocation2 + $0x78] sm:$0xff]
    %v78 = vld [vmem:[#allocation2 + $0x80] sm:$0xff]
    %v79 = vld [vmem:[#allocation2 + $0x88] sm:$0xff]
    %v80 = vld [vmem:[#allocation2 + $0x90] sm:$0xff]
    %v81 = vld [vmem:[#allocation2 + $0x98] sm:$0xff]
    %v82 = vld [vmem:[#allocation2 + $0xa0] sm:$0xff]
    %v83 = vld [vmem:[#allocation2 + $0xa8] sm:$0xff]
    %v84 = vld [vmem:[#allocation2 + $0xb0] sm:$0xff]
    %v85 = vld [vmem:[#allocation2 + $0xb8] sm:$0xff]
    %v86 = vld [vmem:[#allocation2 + $0xc0] sm:$0xff]
    %v87 = vld [vmem:[#allocation2 + $0xc8] sm:$0xff]
    %v88 = vld [vmem:[#allocation2 + $0xd0] sm:$0xff]
    %v89 = vld [vmem:[#allocation2 + $0xd8] sm:$0xff]
    %v90 = vld [vmem:[#allocation2 + $0xe0] sm:$0xff]
    %v91 = vld [vmem:[#allocation2 + $0xe8] sm:$0xff]
    %v92 = vld [vmem:[#allocation2 + $0xf0] sm:$0xff]
    %v93 = vld [vmem:[#allocation2 + $0xf8] sm:$0xff]
    %v94 = vand.u32 2147483647, %v62
    %v95 = vand.u32 2147483647, %v63
    %v96 = vand.u32 2147483647, %v64
    %v97 = vand.u32 2147483647, %v65
    %v98 = vand.u32 2147483647, %v66
    %v99 = vand.u32 2147483647, %v67
    %v100 = vand.u32 2147483647, %v68
    %v101 = vand.u32 2147483647, %v69
    %v102 = vand.u32 2147483647, %v70
    %v103 = vand.u32 2147483647, %v71
    %v104 = vand.u32 2147483647, %v72
    %v105 = vand.u32 2147483647, %v73
    %v106 = vand.u32 2147483647, %v74
    %v107 = vand.u32 2147483647, %v75
    %v108 = vand.u32 2147483647, %v76
    %v109 = vand.u32 2147483647, %v77
    %v110 = vand.u32 2147483647, %v78
    %v111 = vand.u32 2147483647, %v79
    %v112 = vand.u32 2147483647, %v80
    %v113 = vand.u32 2147483647, %v81
    %v114 = vand.u32 2147483647, %v82
    %v115 = vand.u32 2147483647, %v83
    %v116 = vand.u32 2147483647, %v84
    %v117 = vand.u32 2147483647, %v85
    %v118 = vand.u32 2147483647, %v86
    %v119 = vand.u32 2147483647, %v87
    %v120 = vand.u32 2147483647, %v88
    %v121 = vand.u32 2147483647, %v89
    %v122 = vand.u32 2147483647, %v90
    %v123 = vand.u32 2147483647, %v91
    %v124 = vand.u32 2147483647, %v92
    %v125 = vand.u32 2147483647, %v93
    %vm126 = vcmask 785408
    %v127 = vsel %vm126, %v94, 0.0
    %128 = vadd.xlane.f32.xlu0 %v127
    %v129 = vpop.xlane.xlu0 %128
    %v130 = vsel %vm126, %v95, 0.0
    %131 = vadd.xlane.f32.xlu0 %v130
    %v132 = vpop.xlane.xlu0 %131
    %v133 = vsel %vm126, %v96, 0.0
    %134 = vadd.xlane.f32.xlu0 %v133
    %v135 = vpop.xlane.xlu0 %134
    %v136 = vsel %vm126, %v97, 0.0
    %137 = vadd.xlane.f32.xlu0 %v136
    %v138 = vpop.xlane.xlu0 %137
    %v139 = vsel %vm126, %v98, 0.0
    %140 = vadd.xlane.f32.xlu0 %v139
    %v141 = vpop.xlane.xlu0 %140
    %v142 = vsel %vm126, %v99, 0.0
    %143 = vadd.xlane.f32.xlu0 %v142
    %v144 = vpop.xlane.xlu0 %143
    %v145 = vsel %vm126, %v100, 0.0
    %146 = vadd.xlane.f32.xlu0 %v145
    %v147 = vpop.xlane.xlu0 %146
    %v148 = vsel %vm126, %v101, 0.0
    %149 = vadd.xlane.f32.xlu0 %v148
    %v150 = vpop.xlane.xlu0 %149
    %v151 = vsel %vm126, %v102, 0.0
    %152 = vadd.xlane.f32.xlu0 %v151
    %v153 = vpop.xlane.xlu0 %152
    %v154 = vsel %vm126, %v103, 0.0
    %155 = vadd.xlane.f32.xlu0 %v154
    %v156 = vpop.xlane.xlu0 %155
    %v157 = vsel %vm126, %v104, 0.0
    %158 = vadd.xlane.f32.xlu0 %v157
    %v159 = vpop.xlane.xlu0 %158
    %v160 = vsel %vm126, %v105, 0.0
    %161 = vadd.xlane.f32.xlu0 %v160
    %v162 = vpop.xlane.xlu0 %161
    %v163 = vsel %vm126, %v106, 0.0
    %164 = vadd.xlane.f32.xlu0 %v163
    %v165 = vpop.xlane.xlu0 %164
    %v166 = vsel %vm126, %v107, 0.0
    %167 = vadd.xlane.f32.xlu0 %v166
    %v168 = vpop.xlane.xlu0 %167
    %v169 = vsel %vm126, %v108, 0.0
    %170 = vadd.xlane.f32.xlu0 %v169
    %v171 = vpop.xlane.xlu0 %170
    %v172 = vsel %vm126, %v109, 0.0
    %173 = vadd.xlane.f32.xlu0 %v172
    %v174 = vpop.xlane.xlu0 %173
    %v175 = vsel %vm126, %v110, 0.0
    %176 = vadd.xlane.f32.xlu0 %v175
    %v177 = vpop.xlane.xlu0 %176
    %v178 = vsel %vm126, %v111, 0.0
    %179 = vadd.xlane.f32.xlu0 %v178
    %v180 = vpop.xlane.xlu0 %179
    %v181 = vsel %vm126, %v112, 0.0
    %182 = vadd.xlane.f32.xlu0 %v181
    %v183 = vpop.xlane.xlu0 %182
    %v184 = vsel %vm126, %v113, 0.0
    %185 = vadd.xlane.f32.xlu0 %v184
    %v186 = vpop.xlane.xlu0 %185
    %v187 = vsel %vm126, %v114, 0.0
    %188 = vadd.xlane.f32.xlu0 %v187
    %v189 = vpop.xlane.xlu0 %188
    %v190 = vsel %vm126, %v115, 0.0
    %191 = vadd.xlane.f32.xlu0 %v190
    %v192 = vpop.xlane.xlu0 %191
    %v193 = vsel %vm126, %v116, 0.0
    %194 = vadd.xlane.f32.xlu0 %v193
    %v195 = vpop.xlane.xlu0 %194
    %v196 = vsel %vm126, %v117, 0.0
    %197 = vadd.xlane.f32.xlu0 %v196
    %v198 = vpop.xlane.xlu0 %197
    %v199 = vsel %vm126, %v118, 0.0
    %200 = vadd.xlane.f32.xlu0 %v199
    %v201 = vpop.xlane.xlu0 %200
    %v202 = vsel %vm126, %v119, 0.0
    %203 = vadd.xlane.f32.xlu0 %v202
    %v204 = vpop.xlane.xlu0 %203
    %v205 = vsel %vm126, %v120, 0.0
    %206 = vadd.xlane.f32.xlu0 %v205
    %v207 = vpop.xlane.xlu0 %206
    %v208 = vsel %vm126, %v121, 0.0
    %209 = vadd.xlane.f32.xlu0 %v208
    %v210 = vpop.xlane.xlu0 %209
    %v211 = vsel %vm126, %v122, 0.0
    %212 = vadd.xlane.f32.xlu0 %v211
    %v213 = vpop.xlane.xlu0 %212
    %v214 = vsel %vm126, %v123, 0.0
    %215 = vadd.xlane.f32.xlu0 %v214
    %v216 = vpop.xlane.xlu0 %215
    %v217 = vsel %vm126, %v124, 0.0
    %218 = vadd.xlane.f32.xlu0 %v217
    %v219 = vpop.xlane.xlu0 %218
    %v220 = vsel %vm126, %v125, 0.0
    %221 = vadd.xlane.f32.xlu0 %v220
    %v222 = vpop.xlane.xlu0 %221
    %v223 = vmul.f32 %v129, 0.010416667
    %v224 = vmul.f32 %v132, 0.010416667
    %v225 = vmul.f32 %v135, 0.010416667
    %v226 = vmul.f32 %v138, 0.010416667
    %v227 = vmul.f32 %v141, 0.010416667
    %v228 = vmul.f32 %v144, 0.010416667
    %v229 = vmul.f32 %v147, 0.010416667
    %v230 = vmul.f32 %v150, 0.010416667
    %v231 = vmul.f32 %v153, 0.010416667
    %v232 = vmul.f32 %v156, 0.010416667
    %v233 = vmul.f32 %v159, 0.010416667
    %v234 = vmul.f32 %v162, 0.010416667
    %v235 = vmul.f32 %v165, 0.010416667
    %v236 = vmul.f32 %v168, 0.010416667
    %v237 = vmul.f32 %v171, 0.010416667
    %v238 = vmul.f32 %v174, 0.010416667
    %v239 = vmul.f32 %v177, 0.010416667
    %v240 = vmul.f32 %v180, 0.010416667
    %v241 = vmul.f32 %v183, 0.010416667
    %v242 = vmul.f32 %v186, 0.010416667
    %v243 = vmul.f32 %v189, 0.010416667
    %v244 = vmul.f32 %v192, 0.010416667
    %v245 = vmul.f32 %v195, 0.010416667
    %v246 = vmul.f32 %v198, 0.010416667
    %v247 = vmul.f32 %v201, 0.010416667
    %v248 = vmul.f32 %v204, 0.010416667
    %v249 = vmul.f32 %v207, 0.010416667
    %v250 = vmul.f32 %v210, 0.010416667
    %v251 = vmul.f32 %v213, 0.010416667
    %v252 = vmul.f32 %v216, 0.010416667
    %v253 = vmul.f32 %v219, 0.010416667
    %v254 = vmul.f32 %v222, 0.010416667
    %v255 = vld [vmem:[#allocation5] sm:$0xff]
    %v256 = vld [vmem:[#allocation5 + $0x8] sm:$0xff]
    %v257 = vld [vmem:[#allocation5 + $0x10] sm:$0xff]
    %v258 = vld [vmem:[#allocation5 + $0x18] sm:$0xff]
    %v259 = vld [vmem:[#allocation5 + $0x20] sm:$0xff]
    %v260 = vld [vmem:[#allocation5 + $0x28] sm:$0xff]
    %v261 = vld [vmem:[#allocation5 + $0x30] sm:$0xff]
    %v262 = vld [vmem:[#allocation5 + $0x38] sm:$0xff]
    %v263 = vld [vmem:[%s2] sm:$0x1]
    %v265 = vlaneseq
    %v266 = vshrl.u32 %v265, 7
    %v267 = vsub.s32 0, %v266
    %v268 = vrot.slane %v263, %v267
    %v302 = vlaneseq
    %v303 = vand.u32 %v302, 127
    %v304 = vlaneseq
    %v305 = vshrl.u32 %v304, 7
    %v306 = vsub.s32 %v303, %v305
    %v307 = vrot.slane %v223, %v306
    %v308 = vadd.s32 %v303, 4294967288
    %v309 = vlaneseq
    %v310 = vshrl.u32 %v309, 7
    %v311 = vsub.s32 %v308, %v310
    %v312 = vrot.slane %v224, %v311
    %vm313 = vcmask 130112
    %v314 = vsel %vm313, %v312, %v307
    %v315 = vadd.s32 %v303, 4294967280
    %v316 = vlaneseq
    %v317 = vshrl.u32 %v316, 7
    %v318 = vsub.s32 %v315, %v317
    %v319 = vrot.slane %v225, %v318
    %vm320 = vcmask 195712
    %v321 = vsel %vm320, %v319, %v314
    %v322 = vadd.s32 %v303, 4294967272
    %v323 = vlaneseq
    %v324 = vshrl.u32 %v323, 7
    %v325 = vsub.s32 %v322, %v324
    %v326 = vrot.slane %v226, %v325
    %vm327 = vcmask 261312
    %v328 = vsel %vm327, %v326, %v321
    %v329 = vadd.s32 %v303, 4294967264
    %v330 = vlaneseq
    %v331 = vshrl.u32 %v330, 7
    %v332 = vsub.s32 %v329, %v331
    %v333 = vrot.slane %v227, %v332
    %vm334 = vcmask 326912
    %v335 = vsel %vm334, %v333, %v328
    %v336 = vadd.s32 %v303, 4294967256
    %v337 = vlaneseq
    %v338 = vshrl.u32 %v337, 7
    %v339 = vsub.s32 %v336, %v338
    %v340 = vrot.slane %v228, %v339
    %vm341 = vcmask 392512
    %v342 = vsel %vm341, %v340, %v335
    %v343 = vadd.s32 %v303, 4294967248
    %v344 = vlaneseq
    %v345 = vshrl.u32 %v344, 7
    %v346 = vsub.s32 %v343, %v345
    %v347 = vrot.slane %v229, %v346
    %vm348 = vcmask 458112
    %v349 = vsel %vm348, %v347, %v342
    %v350 = vadd.s32 %v303, 4294967240
    %v351 = vlaneseq
    %v352 = vshrl.u32 %v351, 7
    %v353 = vsub.s32 %v350, %v352
    %v354 = vrot.slane %v230, %v353
    %vm355 = vcmask 523712
    %v356 = vsel %vm355, %v354, %v349
    %v357 = vlaneseq
    %v358 = vshrl.u32 %v357, 7
    %v359 = vsub.s32 %v303, %v358
    %v360 = vrot.slane %v231, %v359
    %v361 = vlaneseq
    %v362 = vshrl.u32 %v361, 7
    %v363 = vsub.s32 %v308, %v362
    %v364 = vrot.slane %v232, %v363
    %v365 = vsel %vm313, %v364, %v360
    %v366 = vlaneseq
    %v367 = vshrl.u32 %v366, 7
    %v368 = vsub.s32 %v315, %v367
    %v369 = vrot.slane %v233, %v368
    %v370 = vsel %vm320, %v369, %v365
    %v371 = vlaneseq
    %v372 = vshrl.u32 %v371, 7
    %v373 = vsub.s32 %v322, %v372
    %v374 = vrot.slane %v234, %v373
    %v375 = vsel %vm327, %v374, %v370
    %v376 = vlaneseq
    %v377 = vshrl.u32 %v376, 7
    %v378 = vsub.s32 %v329, %v377
    %v379 = vrot.slane %v235, %v378
    %v380 = vsel %vm334, %v379, %v375
    %v381 = vlaneseq
    %v382 = vshrl.u32 %v381, 7
    %v383 = vsub.s32 %v336, %v382
    %v384 = vrot.slane %v236, %v383
    %v385 = vsel %vm341, %v384, %v380
    %v386 = vlaneseq
    %v387 = vshrl.u32 %v386, 7
    %v388 = vsub.s32 %v343, %v387
    %v389 = vrot.slane %v237, %v388
    %v390 = vsel %vm348, %v389, %v385
    %v391 = vlaneseq
    %v392 = vshrl.u32 %v391, 7
    %v393 = vsub.s32 %v350, %v392
    %v394 = vrot.slane %v238, %v393
    %v395 = vsel %vm355, %v394, %v390
    %v396 = vlaneseq
    %v397 = vshrl.u32 %v396, 7
    %v398 = vsub.s32 %v303, %v397
    %v399 = vrot.slane %v239, %v398
    %v400 = vlaneseq
    %v401 = vshrl.u32 %v400, 7
    %v402 = vsub.s32 %v308, %v401
    %v403 = vrot.slane %v240, %v402
    %v404 = vsel %vm313, %v403, %v399
    %v405 = vlaneseq
    %v406 = vshrl.u32 %v405, 7
    %v407 = vsub.s32 %v315, %v406
    %v408 = vrot.slane %v241, %v407
    %v409 = vsel %vm320, %v408, %v404
    %v410 = vlaneseq
    %v411 = vshrl.u32 %v410, 7
    %v412 = vsub.s32 %v322, %v411
    %v413 = vrot.slane %v242, %v412
    %v414 = vsel %vm327, %v413, %v409
    %v415 = vlaneseq
    %v416 = vshrl.u32 %v415, 7
    %v417 = vsub.s32 %v329, %v416
    %v418 = vrot.slane %v243, %v417
    %v419 = vsel %vm334, %v418, %v414
    %v420 = vlaneseq
    %v421 = vshrl.u32 %v420, 7
    %v422 = vsub.s32 %v336, %v421
    %v423 = vrot.slane %v244, %v422
    %v424 = vsel %vm341, %v423, %v419
    %v425 = vlaneseq
    %v426 = vshrl.u32 %v425, 7
    %v427 = vsub.s32 %v343, %v426
    %v428 = vrot.slane %v245, %v427
    %v429 = vsel %vm348, %v428, %v424
    %v430 = vlaneseq
    %v431 = vshrl.u32 %v430, 7
    %v432 = vsub.s32 %v350, %v431
    %v433 = vrot.slane %v246, %v432
    %v434 = vsel %vm355, %v433, %v429
    %v435 = vlaneseq
    %v436 = vshrl.u32 %v435, 7
    %v437 = vsub.s32 %v303, %v436
    %v438 = vrot.slane %v247, %v437
    %v439 = vlaneseq
    %v440 = vshrl.u32 %v439, 7
    %v441 = vsub.s32 %v308, %v440
    %v442 = vrot.slane %v248, %v441
    %v443 = vsel %vm313, %v442, %v438
    %v444 = vlaneseq
    %v445 = vshrl.u32 %v444, 7
    %v446 = vsub.s32 %v315, %v445
    %v447 = vrot.slane %v249, %v446
    %v448 = vsel %vm320, %v447, %v443
    %v449 = vlaneseq
    %v450 = vshrl.u32 %v449, 7
    %v451 = vsub.s32 %v322, %v450
    %v452 = vrot.slane %v250, %v451
    %v453 = vsel %vm327, %v452, %v448
    %v454 = vlaneseq
    %v455 = vshrl.u32 %v454, 7
    %v456 = vsub.s32 %v329, %v455
    %v457 = vrot.slane %v251, %v456
    %v458 = vsel %vm334, %v457, %v453
    %v459 = vlaneseq
    %v460 = vshrl.u32 %v459, 7
    %v461 = vsub.s32 %v336, %v460
    %v462 = vrot.slane %v252, %v461
    %v463 = vsel %vm341, %v462, %v458
    %v464 = vlaneseq
    %v465 = vshrl.u32 %v464, 7
    %v466 = vsub.s32 %v343, %v465
    %v467 = vrot.slane %v253, %v466
    %v468 = vsel %vm348, %v467, %v463
    %v469 = vlaneseq
    %v470 = vshrl.u32 %v469, 7
    %v471 = vsub.s32 %v350, %v470
    %v472 = vrot.slane %v254, %v471
    %v473 = vsel %vm355, %v472, %v468
    %vm474 = vcmask 1041409
    %v475 = vsel %vm474, %v395, %v356
    %vm476 = vcmask 1042434
    %v477 = vsel %vm476, %v434, %v475
    %vm478 = vcmask 1043459
    %v479 = vsel %vm478, %v473, %v477
    %vm480 = vcmask 523264
    %v481 = vsel %vm480, %v479, 0
    %483 = vmatprep.subr.mxu0 0.0
    %484 = vmatpush1.msra.mxu0 %v255
    %485 = vmatprep.subr.mxu0 0.0
    %486 = vmatpush1.msra.mxu0 %v256
    %487 = vmatprep.subr.mxu0 0.0
    %488 = vmatpush1.msra.mxu0 %v257
    %489 = vmatprep.subr.mxu0 0.0
    %490 = vmatpush1.msra.mxu0 %v258
    %491 = vmatprep.subr.mxu0 0.0
    %492 = vmatpush1.msra.mxu0 %v259
    %493 = vmatprep.subr.mxu0 0.0
    %494 = vmatpush1.msra.mxu0 %v260
    %495 = vmatprep.subr.mxu0 0.0
    %496 = vmatpush1.msra.mxu0 %v261
    %497 = vmatprep.subr.mxu0 0.0
    %498 = vmatpush1.msra.mxu0 %v262
    %499 = vmatprep.subr.mxu0 0.0
    %500 = vmatpush1.msra.mxu0 0.0
    %501 = vmatprep.subr.mxu0 0.0
    %502 = vmatpush1.msra.mxu0 0.0
    %503 = vmatprep.subr.mxu0 0.0
    %504 = vmatpush1.msra.mxu0 0.0
    %505 = vmatprep.subr.mxu0 0.0
    %506 = vmatpush1.msra.mxu0 0.0
    %507 = vmatprep.subr.mxu0 0.0
    %508 = vmatpush1.msra.mxu0 0.0
    %509 = vmatprep.subr.mxu0 0.0
    %510 = vmatpush1.msra.mxu0 0.0
    %511 = vmatprep.subr.mxu0 0.0
    %512 = vmatpush1.msra.mxu0 0.0
    %513 = vmatprep.subr.mxu0 0.0
    %514 = vmatpush1.msra.mxu0 0.0
    %515 = vmatprep.subr.mxu0 0.0
    %516 = vmatpush1.msra.mxu0 0.0
    %517 = vmatprep.subr.mxu0 0.0
    %518 = vmatpush1.msra.mxu0 0.0
    %519 = vmatprep.subr.mxu0 0.0
    %520 = vmatpush1.msra.mxu0 0.0
    %521 = vmatprep.subr.mxu0 0.0
    %522 = vmatpush1.msra.mxu0 0.0
    %523 = vmatprep.subr.mxu0 0.0
    %524 = vmatpush1.msra.mxu0 0.0
    %525 = vmatprep.subr.mxu0 0.0
    %526 = vmatpush1.msra.mxu0 0.0
    %527 = vmatprep.subr.mxu0 0.0
    %528 = vmatpush1.msra.mxu0 0.0
    %529 = vmatprep.subr.mxu0 0.0
    %530 = vmatpush1.msra.mxu0 0.0
    %531 = vmatprep.subr.mxu0 0.0
    %532 = vmatpush1.msra.mxu0 0.0
    %533 = vmatprep.subr.mxu0 0.0
    %534 = vmatpush1.msra.mxu0 0.0
    %535 = vmatprep.subr.mxu0 0.0
    %536 = vmatpush1.msra.mxu0 0.0
    %537 = vmatprep.subr.mxu0 0.0
    %538 = vmatpush1.msra.mxu0 0.0
    %539 = vmatprep.subr.mxu0 0.0
    %540 = vmatpush1.msra.mxu0 0.0
    %541 = vmatprep.subr.mxu0 0.0
    %542 = vmatpush1.msra.mxu0 0.0
    %543 = vmatprep.subr.mxu0 0.0
    %544 = vmatpush1.msra.mxu0 0.0
    %545 = vmatprep.subr.mxu0 0.0
    %546 = vmatpush1.msra.mxu0 0.0
    %547 = vmatprep.mubr.f32.mxu0 0.0
    %548 = vmatmul.mubr.f32.gmra.mrb[0].mxu0 %v481
    %v549 = vpop.f32.mrb[0].mxu0
    %v550 = vadd.f32 %v268, %v549
    %v551 = vpop.f32.mrb[0].mxu0
    %552 = vdwg.mxu0
    %v553 = vmax.f32 %v550, 0.0
    %v554 = vld [vmem:[#allocation7] sm:$0xff]
    %v555 = vld [vmem:[#allocation7 + $0x8] sm:$0xff]
    %v556 = vld [vmem:[#allocation7 + $0x10] sm:$0xff]
    %v557 = vld [vmem:[#allocation7 + $0x18] sm:$0xff]
    %v558 = vld [vmem:[#allocation7 + $0x20] sm:$0xff]
    %v559 = vld [vmem:[#allocation7 + $0x28] sm:$0xff]
    %v560 = vld [vmem:[#allocation7 + $0x30] sm:$0xff]
    %v561 = vld [vmem:[#allocation7 + $0x38] sm:$0xff]
    %v562 = vld [vmem:[%s4] sm:$0x1]
    %v564 = vlaneseq
    %v565 = vshrl.u32 %v564, 7
    %v566 = vsub.s32 0, %v565
    %v567 = vrot.slane %v562, %v566
    %v570 = vsel %vm480, %v553, 0
    %572 = vmatprep.subr.mxu0 0.0
    %573 = vmatpush1.msra.mxu0 %v554
    %574 = vmatprep.subr.mxu0 0.0
    %575 = vmatpush1.msra.mxu0 %v555
    %576 = vmatprep.subr.mxu0 0.0
    %577 = vmatpush1.msra.mxu0 %v556
    %578 = vmatprep.subr.mxu0 0.0
    %579 = vmatpush1.msra.mxu0 %v557
    %580 = vmatprep.subr.mxu0 0.0
    %581 = vmatpush1.msra.mxu0 %v558
    %582 = vmatprep.subr.mxu0 0.0
    %583 = vmatpush1.msra.mxu0 %v559
    %584 = vmatprep.subr.mxu0 0.0
    %585 = vmatpush1.msra.mxu0 %v560
    %586 = vmatprep.subr.mxu0 0.0
    %587 = vmatpush1.msra.mxu0 %v561
    %588 = vmatprep.subr.mxu0 0.0
    %589 = vmatpush1.msra.mxu0 0.0
    %590 = vmatprep.subr.mxu0 0.0
    %591 = vmatpush1.msra.mxu0 0.0
    %592 = vmatprep.subr.mxu0 0.0
    %593 = vmatpush1.msra.mxu0 0.0
    %594 = vmatprep.subr.mxu0 0.0
    %595 = vmatpush1.msra.mxu0 0.0
    %596 = vmatprep.subr.mxu0 0.0
    %597 = vmatpush1.msra.mxu0 0.0
    %598 = vmatprep.subr.mxu0 0.0
    %599 = vmatpush1.msra.mxu0 0.0
    %600 = vmatprep.subr.mxu0 0.0
    %601 = vmatpush1.msra.mxu0 0.0
    %602 = vmatprep.subr.mxu0 0.0
    %603 = vmatpush1.msra.mxu0 0.0
    %604 = vmatprep.subr.mxu0 0.0
    %605 = vmatpush1.msra.mxu0 0.0
    %606 = vmatprep.subr.mxu0 0.0
    %607 = vmatpush1.msra.mxu0 0.0
    %608 = vmatprep.subr.mxu0 0.0
    %609 = vmatpush1.msra.mxu0 0.0
    %610 = vmatprep.subr.mxu0 0.0
    %611 = vmatpush1.msra.mxu0 0.0
    %612 = vmatprep.subr.mxu0 0.0
    %613 = vmatpush1.msra.mxu0 0.0
    %614 = vmatprep.subr.mxu0 0.0
    %615 = vmatpush1.msra.mxu0 0.0
    %616 = vmatprep.subr.mxu0 0.0
    %617 = vmatpush1.msra.mxu0 0.0
    %618 = vmatprep.subr.mxu0 0.0
    %619 = vmatpush1.msra.mxu0 0.0
    %620 = vmatprep.subr.mxu0 0.0
    %621 = vmatpush1.msra.mxu0 0.0
    %622 = vmatprep.subr.mxu0 0.0
    %623 = vmatpush1.msra.mxu0 0.0
    %624 = vmatprep.subr.mxu0 0.0
    %625 = vmatpush1.msra.mxu0 0.0
    %626 = vmatprep.subr.mxu0 0.0
    %627 = vmatpush1.msra.mxu0 0.0
    %628 = vmatprep.subr.mxu0 0.0
    %629 = vmatpush1.msra.mxu0 0.0
    %630 = vmatprep.subr.mxu0 0.0
    %631 = vmatpush1.msra.mxu0 0.0
    %632 = vmatprep.subr.mxu0 0.0
    %633 = vmatpush1.msra.mxu0 0.0
    %634 = vmatprep.subr.mxu0 0.0
    %635 = vmatpush1.msra.mxu0 0.0
    %636 = vmatprep.mubr.f32.mxu0 0.0
    %637 = vmatmul.mubr.f32.gmra.mrb[0].mxu0 %v570
    %v638 = vpop.f32.mrb[0].mxu0
    %v639 = vadd.f32 %v567, %v638
    %v640 = vpop.f32.mrb[0].mxu0
    %641 = vdwg.mxu0
    %v642 = vxor.u32 %v639, 2147483648
    %v643 = vmul.f32 %v642, 1.442695
    %v644 = vpow.pop %v643
    %v645 = vadd.f32 %v644, 1.0
    %v646 = vrcp.pop %v645
    %v647 = vmul.f32 1.0, %v646
    %v649 = vlaneseq
    %v650 = vshrl.u32 %v649, 7
    %v651 = vsub.s32 0, %v650
    %v652 = vrot.slane %v647, %v651
    %654 = vbcast.lane.b32.xlu0 %v652, 256
    %v655 = vpop.permute.xlu0 %654
    %s657 = sor.u32 256, 8
    %658 = vbcast.lane.b32.xlu0 %v652, %s657
    %v659 = vpop.permute.xlu0 %658
    %s661 = sor.u32 256, 16
    %662 = vbcast.lane.b32.xlu0 %v652, %s661
    %v663 = vpop.permute.xlu0 %662
    %s665 = sor.u32 256, 24
    %666 = vbcast.lane.b32.xlu0 %v652, %s665
    %v667 = vpop.permute.xlu0 %666
    %s669 = sor.u32 256, 32
    %670 = vbcast.lane.b32.xlu0 %v652, %s669
    %v671 = vpop.permute.xlu0 %670
    %s673 = sor.u32 256, 40
    %674 = vbcast.lane.b32.xlu0 %v652, %s673
    %v675 = vpop.permute.xlu0 %674
    %s677 = sor.u32 256, 48
    %678 = vbcast.lane.b32.xlu0 %v652, %s677
    %v679 = vpop.permute.xlu0 %678
    %s681 = sor.u32 256, 56
    %682 = vbcast.lane.b32.xlu0 %v652, %s681
    %v683 = vpop.permute.xlu0 %682
    %v684 = vlaneseq
    %v685 = vshrl.u32 %v684, 7
    %v686 = vsub.s32 1, %v685
    %v687 = vrot.slane %v647, %v686
    %689 = vbcast.lane.b32.xlu0 %v687, 256
    %v690 = vpop.permute.xlu0 %689
    %s692 = sor.u32 256, 8
    %693 = vbcast.lane.b32.xlu0 %v687, %s692
    %v694 = vpop.permute.xlu0 %693
    %s696 = sor.u32 256, 16
    %697 = vbcast.lane.b32.xlu0 %v687, %s696
    %v698 = vpop.permute.xlu0 %697
    %s700 = sor.u32 256, 24
    %701 = vbcast.lane.b32.xlu0 %v687, %s700
    %v702 = vpop.permute.xlu0 %701
    %s704 = sor.u32 256, 32
    %705 = vbcast.lane.b32.xlu0 %v687, %s704
    %v706 = vpop.permute.xlu0 %705
    %s708 = sor.u32 256, 40
    %709 = vbcast.lane.b32.xlu0 %v687, %s708
    %v710 = vpop.permute.xlu0 %709
    %s712 = sor.u32 256, 48
    %713 = vbcast.lane.b32.xlu0 %v687, %s712
    %v714 = vpop.permute.xlu0 %713
    %s716 = sor.u32 256, 56
    %717 = vbcast.lane.b32.xlu0 %v687, %s716
    %v718 = vpop.permute.xlu0 %717
    %v719 = vlaneseq
    %v720 = vshrl.u32 %v719, 7
    %v721 = vsub.s32 2, %v720
    %v722 = vrot.slane %v647, %v721
    %724 = vbcast.lane.b32.xlu0 %v722, 256
    %v725 = vpop.permute.xlu0 %724
    %s727 = sor.u32 256, 8
    %728 = vbcast.lane.b32.xlu0 %v722, %s727
    %v729 = vpop.permute.xlu0 %728
    %s731 = sor.u32 256, 16
    %732 = vbcast.lane.b32.xlu0 %v722, %s731
    %v733 = vpop.permute.xlu0 %732
    %s735 = sor.u32 256, 24
    %736 = vbcast.lane.b32.xlu0 %v722, %s735
    %v737 = vpop.permute.xlu0 %736
    %s739 = sor.u32 256, 32
    %740 = vbcast.lane.b32.xlu0 %v722, %s739
    %v741 = vpop.permute.xlu0 %740
    %s743 = sor.u32 256, 40
    %744 = vbcast.lane.b32.xlu0 %v722, %s743
    %v745 = vpop.permute.xlu0 %744
    %s747 = sor.u32 256, 48
    %748 = vbcast.lane.b32.xlu0 %v722, %s747
    %v749 = vpop.permute.xlu0 %748
    %s751 = sor.u32 256, 56
    %752 = vbcast.lane.b32.xlu0 %v722, %s751
    %v753 = vpop.permute.xlu0 %752
    %v754 = vlaneseq
    %v755 = vshrl.u32 %v754, 7
    %v756 = vsub.s32 3, %v755
    %v757 = vrot.slane %v647, %v756
    %759 = vbcast.lane.b32.xlu0 %v757, 256
    %v760 = vpop.permute.xlu0 %759
    %s762 = sor.u32 256, 8
    %763 = vbcast.lane.b32.xlu0 %v757, %s762
    %v764 = vpop.permute.xlu0 %763
    %s766 = sor.u32 256, 16
    %767 = vbcast.lane.b32.xlu0 %v757, %s766
    %v768 = vpop.permute.xlu0 %767
    %s770 = sor.u32 256, 24
    %771 = vbcast.lane.b32.xlu0 %v757, %s770
    %v772 = vpop.permute.xlu0 %771
    %s774 = sor.u32 256, 32
    %775 = vbcast.lane.b32.xlu0 %v757, %s774
    %v776 = vpop.permute.xlu0 %775
    %s778 = sor.u32 256, 40
    %779 = vbcast.lane.b32.xlu0 %v757, %s778
    %v780 = vpop.permute.xlu0 %779
    %s782 = sor.u32 256, 48
    %783 = vbcast.lane.b32.xlu0 %v757, %s782
    %v784 = vpop.permute.xlu0 %783
    %s786 = sor.u32 256, 56
    %787 = vbcast.lane.b32.xlu0 %v757, %s786
    %v788 = vpop.permute.xlu0 %787
    %v821 = vmul.f32 %v223, %v655
    %v822 = vmul.f32 %v224, %v659
    %v823 = vmul.f32 %v225, %v663
    %v824 = vmul.f32 %v226, %v667
    %v825 = vmul.f32 %v227, %v671
    %v826 = vmul.f32 %v228, %v675
    %v827 = vmul.f32 %v229, %v679
    %v828 = vmul.f32 %v230, %v683
    %v829 = vmul.f32 %v231, %v690
    %v830 = vmul.f32 %v232, %v694
    %v831 = vmul.f32 %v233, %v698
    %v832 = vmul.f32 %v234, %v702
    %v833 = vmul.f32 %v235, %v706
    %v834 = vmul.f32 %v236, %v710
    %v835 = vmul.f32 %v237, %v714
    %v836 = vmul.f32 %v238, %v718
    %v837 = vmul.f32 %v239, %v725
    %v838 = vmul.f32 %v240, %v729
    %v839 = vmul.f32 %v241, %v733
    %v840 = vmul.f32 %v242, %v737
    %v841 = vmul.f32 %v243, %v741
    %v842 = vmul.f32 %v244, %v745
    %v843 = vmul.f32 %v245, %v749
    %v844 = vmul.f32 %v246, %v753
    %v845 = vmul.f32 %v247, %v760
    %v846 = vmul.f32 %v248, %v764
    %v847 = vmul.f32 %v249, %v768
    %v848 = vmul.f32 %v250, %v772
    %v849 = vmul.f32 %v251, %v776
    %v850 = vmul.f32 %v252, %v780
    %v851 = vmul.f32 %v253, %v784
    %v852 = vmul.f32 %v254, %v788
    %v853 = vsub.f32 0.0, %v821
    %v854 = vsub.f32 0.0, %v822
    %v855 = vsub.f32 0.0, %v823
    %v856 = vsub.f32 0.0, %v824
    %v857 = vsub.f32 0.0, %v825
    %v858 = vsub.f32 0.0, %v826
    %v859 = vsub.f32 0.0, %v827
    %v860 = vsub.f32 0.0, %v828
    %v861 = vsub.f32 0.0, %v829
    %v862 = vsub.f32 0.0, %v830
    %v863 = vsub.f32 0.0, %v831
    %v864 = vsub.f32 0.0, %v832
    %v865 = vsub.f32 0.0, %v833
    %v866 = vsub.f32 0.0, %v834
    %v867 = vsub.f32 0.0, %v835
    %v868 = vsub.f32 0.0, %v836
    %v869 = vsub.f32 0.0, %v837
    %v870 = vsub.f32 0.0, %v838
    %v871 = vsub.f32 0.0, %v839
    %v872 = vsub.f32 0.0, %v840
    %v873 = vsub.f32 0.0, %v841
    %v874 = vsub.f32 0.0, %v842
    %v875 = vsub.f32 0.0, %v843
    %v876 = vsub.f32 0.0, %v844
    %v877 = vsub.f32 0.0, %v845
    %v878 = vsub.f32 0.0, %v846
    %v879 = vsub.f32 0.0, %v847
    %v880 = vsub.f32 0.0, %v848
    %v881 = vsub.f32 0.0, %v849
    %v882 = vsub.f32 0.0, %v850
    %v883 = vsub.f32 0.0, %v851
    %v884 = vsub.f32 0.0, %v852
    %886 = vset.pattern.permute.xlu0 0
    %887 = vperm.xlu0 %886, %v853
    %v888 = vpop.permute.xlu0 %887
    %891 = vset.pattern.permute.xlu0 0
    %892 = vperm.xlu0 %891, %v854
    %v893 = vpop.permute.xlu0 %892
    %896 = vset.pattern.permute.xlu0 0
    %897 = vperm.xlu0 %896, %v855
    %v898 = vpop.permute.xlu0 %897
    %901 = vset.pattern.permute.xlu0 0
    %902 = vperm.xlu0 %901, %v856
    %v903 = vpop.permute.xlu0 %902
    %906 = vset.pattern.permute.xlu0 0
    %907 = vperm.xlu0 %906, %v857
    %v908 = vpop.permute.xlu0 %907
    %911 = vset.pattern.permute.xlu0 0
    %912 = vperm.xlu0 %911, %v858
    %v913 = vpop.permute.xlu0 %912
    %916 = vset.pattern.permute.xlu0 0
    %917 = vperm.xlu0 %916, %v859
    %v918 = vpop.permute.xlu0 %917
    %921 = vset.pattern.permute.xlu0 0
    %922 = vperm.xlu0 %921, %v860
    %v923 = vpop.permute.xlu0 %922
    %926 = vset.pattern.permute.xlu0 0
    %927 = vperm.xlu0 %926, %v861
    %v928 = vpop.permute.xlu0 %927
    %931 = vset.pattern.permute.xlu0 0
    %932 = vperm.xlu0 %931, %v862
    %v933 = vpop.permute.xlu0 %932
    %936 = vset.pattern.permute.xlu0 0
    %937 = vperm.xlu0 %936, %v863
    %v938 = vpop.permute.xlu0 %937
    %941 = vset.pattern.permute.xlu0 0
    %942 = vperm.xlu0 %941, %v864
    %v943 = vpop.permute.xlu0 %942
    %946 = vset.pattern.permute.xlu0 0
    %947 = vperm.xlu0 %946, %v865
    %v948 = vpop.permute.xlu0 %947
    %951 = vset.pattern.permute.xlu0 0
    %952 = vperm.xlu0 %951, %v866
    %v953 = vpop.permute.xlu0 %952
    %956 = vset.pattern.permute.xlu0 0
    %957 = vperm.xlu0 %956, %v867
    %v958 = vpop.permute.xlu0 %957
    %961 = vset.pattern.permute.xlu0 0
    %962 = vperm.xlu0 %961, %v868
    %v963 = vpop.permute.xlu0 %962
    %966 = vset.pattern.permute.xlu0 0
    %967 = vperm.xlu0 %966, %v869
    %v968 = vpop.permute.xlu0 %967
    %971 = vset.pattern.permute.xlu0 0
    %972 = vperm.xlu0 %971, %v870
    %v973 = vpop.permute.xlu0 %972
    %976 = vset.pattern.permute.xlu0 0
    %977 = vperm.xlu0 %976, %v871
    %v978 = vpop.permute.xlu0 %977
    %981 = vset.pattern.permute.xlu0 0
    %982 = vperm.xlu0 %981, %v872
    %v983 = vpop.permute.xlu0 %982
    %986 = vset.pattern.permute.xlu0 0
    %987 = vperm.xlu0 %986, %v873
    %v988 = vpop.permute.xlu0 %987
    %991 = vset.pattern.permute.xlu0 0
    %992 = vperm.xlu0 %991, %v874
    %v993 = vpop.permute.xlu0 %992
    %996 = vset.pattern.permute.xlu0 0
    %997 = vperm.xlu0 %996, %v875
    %v998 = vpop.permute.xlu0 %997
    %1001 = vset.pattern.permute.xlu0 0
    %1002 = vperm.xlu0 %1001, %v876
    %v1003 = vpop.permute.xlu0 %1002
    %1006 = vset.pattern.permute.xlu0 0
    %1007 = vperm.xlu0 %1006, %v877
    %v1008 = vpop.permute.xlu0 %1007
    %1011 = vset.pattern.permute.xlu0 0
    %1012 = vperm.xlu0 %1011, %v878
    %v1013 = vpop.permute.xlu0 %1012
    %1016 = vset.pattern.permute.xlu0 0
    %1017 = vperm.xlu0 %1016, %v879
    %v1018 = vpop.permute.xlu0 %1017
    %1021 = vset.pattern.permute.xlu0 0
    %1022 = vperm.xlu0 %1021, %v880
    %v1023 = vpop.permute.xlu0 %1022
    %1026 = vset.pattern.permute.xlu0 0
    %1027 = vperm.xlu0 %1026, %v881
    %v1028 = vpop.permute.xlu0 %1027
    %1031 = vset.pattern.permute.xlu0 0
    %1032 = vperm.xlu0 %1031, %v882
    %v1033 = vpop.permute.xlu0 %1032
    %1036 = vset.pattern.permute.xlu0 0
    %1037 = vperm.xlu0 %1036, %v883
    %v1038 = vpop.permute.xlu0 %1037
    %1041 = vset.pattern.permute.xlu0 0
    %1042 = vperm.xlu0 %1041, %v884
    %v1043 = vpop.permute.xlu0 %1042
    %v1045 = vmax.f32 %v888, %v62
    %v1046 = vmax.f32 %v893, %v63
    %v1047 = vmax.f32 %v898, %v64
    %v1048 = vmax.f32 %v903, %v65
    %v1049 = vmax.f32 %v908, %v66
    %v1050 = vmax.f32 %v913, %v67
    %v1051 = vmax.f32 %v918, %v68
    %v1052 = vmax.f32 %v923, %v69
    %v1053 = vmax.f32 %v928, %v70
    %v1054 = vmax.f32 %v933, %v71
    %v1055 = vmax.f32 %v938, %v72
    %v1056 = vmax.f32 %v943, %v73
    %v1057 = vmax.f32 %v948, %v74
    %v1058 = vmax.f32 %v953, %v75
    %v1059 = vmax.f32 %v958, %v76
    %v1060 = vmax.f32 %v963, %v77
    %v1061 = vmax.f32 %v968, %v78
    %v1062 = vmax.f32 %v973, %v79
    %v1063 = vmax.f32 %v978, %v80
    %v1064 = vmax.f32 %v983, %v81
    %v1065 = vmax.f32 %v988, %v82
    %v1066 = vmax.f32 %v993, %v83
    %v1067 = vmax.f32 %v998, %v84
    %v1068 = vmax.f32 %v1003, %v85
    %v1069 = vmax.f32 %v1008, %v86
    %v1070 = vmax.f32 %v1013, %v87
    %v1071 = vmax.f32 %v1018, %v88
    %v1072 = vmax.f32 %v1023, %v89
    %v1073 = vmax.f32 %v1028, %v90
    %v1074 = vmax.f32 %v1033, %v91
    %v1075 = vmax.f32 %v1038, %v92
    %v1076 = vmax.f32 %v1043, %v93
    %1078 = vset.pattern.permute.xlu0 0
    %1079 = vperm.xlu0 %1078, %v821
    %v1080 = vpop.permute.xlu0 %1079
    %1083 = vset.pattern.permute.xlu0 0
    %1084 = vperm.xlu0 %1083, %v822
    %v1085 = vpop.permute.xlu0 %1084
    %1088 = vset.pattern.permute.xlu0 0
    %1089 = vperm.xlu0 %1088, %v823
    %v1090 = vpop.permute.xlu0 %1089
    %1093 = vset.pattern.permute.xlu0 0
    %1094 = vperm.xlu0 %1093, %v824
    %v1095 = vpop.permute.xlu0 %1094
    %1098 = vset.pattern.permute.xlu0 0
    %1099 = vperm.xlu0 %1098, %v825
    %v1100 = vpop.permute.xlu0 %1099
    %1103 = vset.pattern.permute.xlu0 0
    %1104 = vperm.xlu0 %1103, %v826
    %v1105 = vpop.permute.xlu0 %1104
    %1108 = vset.pattern.permute.xlu0 0
    %1109 = vperm.xlu0 %1108, %v827
    %v1110 = vpop.permute.xlu0 %1109
    %1113 = vset.pattern.permute.xlu0 0
    %1114 = vperm.xlu0 %1113, %v828
    %v1115 = vpop.permute.xlu0 %1114
    %1118 = vset.pattern.permute.xlu0 0
    %1119 = vperm.xlu0 %1118, %v829
    %v1120 = vpop.permute.xlu0 %1119
    %1123 = vset.pattern.permute.xlu0 0
    %1124 = vperm.xlu0 %1123, %v830
    %v1125 = vpop.permute.xlu0 %1124
    %1128 = vset.pattern.permute.xlu0 0
    %1129 = vperm.xlu0 %1128, %v831
    %v1130 = vpop.permute.xlu0 %1129
    %1133 = vset.pattern.permute.xlu0 0
    %1134 = vperm.xlu0 %1133, %v832
    %v1135 = vpop.permute.xlu0 %1134
    %1138 = vset.pattern.permute.xlu0 0
    %1139 = vperm.xlu0 %1138, %v833
    %v1140 = vpop.permute.xlu0 %1139
    %1143 = vset.pattern.permute.xlu0 0
    %1144 = vperm.xlu0 %1143, %v834
    %v1145 = vpop.permute.xlu0 %1144
    %1148 = vset.pattern.permute.xlu0 0
    %1149 = vperm.xlu0 %1148, %v835
    %v1150 = vpop.permute.xlu0 %1149
    %1153 = vset.pattern.permute.xlu0 0
    %1154 = vperm.xlu0 %1153, %v836
    %v1155 = vpop.permute.xlu0 %1154
    %1158 = vset.pattern.permute.xlu0 0
    %1159 = vperm.xlu0 %1158, %v837
    %v1160 = vpop.permute.xlu0 %1159
    %1163 = vset.pattern.permute.xlu0 0
    %1164 = vperm.xlu0 %1163, %v838
    %v1165 = vpop.permute.xlu0 %1164
    %1168 = vset.pattern.permute.xlu0 0
    %1169 = vperm.xlu0 %1168, %v839
    %v1170 = vpop.permute.xlu0 %1169
    %1173 = vset.pattern.permute.xlu0 0
    %1174 = vperm.xlu0 %1173, %v840
    %v1175 = vpop.permute.xlu0 %1174
    %1178 = vset.pattern.permute.xlu0 0
    %1179 = vperm.xlu0 %1178, %v841
    %v1180 = vpop.permute.xlu0 %1179
    %1183 = vset.pattern.permute.xlu0 0
    %1184 = vperm.xlu0 %1183, %v842
    %v1185 = vpop.permute.xlu0 %1184
    %1188 = vset.pattern.permute.xlu0 0
    %1189 = vperm.xlu0 %1188, %v843
    %v1190 = vpop.permute.xlu0 %1189
    %1193 = vset.pattern.permute.xlu0 0
    %1194 = vperm.xlu0 %1193, %v844
    %v1195 = vpop.permute.xlu0 %1194
    %1198 = vset.pattern.permute.xlu0 0
    %1199 = vperm.xlu0 %1198, %v845
    %v1200 = vpop.permute.xlu0 %1199
    %1203 = vset.pattern.permute.xlu0 0
    %1204 = vperm.xlu0 %1203, %v846
    %v1205 = vpop.permute.xlu0 %1204
    %1208 = vset.pattern.permute.xlu0 0
    %1209 = vperm.xlu0 %1208, %v847
    %v1210 = vpop.permute.xlu0 %1209
    %1213 = vset.pattern.permute.xlu0 0
    %1214 = vperm.xlu0 %1213, %v848
    %v1215 = vpop.permute.xlu0 %1214
    %1218 = vset.pattern.permute.xlu0 0
    %1219 = vperm.xlu0 %1218, %v849
    %v1220 = vpop.permute.xlu0 %1219
    %1223 = vset.pattern.permute.xlu0 0
    %1224 = vperm.xlu0 %1223, %v850
    %v1225 = vpop.permute.xlu0 %1224
    %1228 = vset.pattern.permute.xlu0 0
    %1229 = vperm.xlu0 %1228, %v851
    %v1230 = vpop.permute.xlu0 %1229
    %1233 = vset.pattern.permute.xlu0 0
    %1234 = vperm.xlu0 %1233, %v852
    %v1235 = vpop.permute.xlu0 %1234
    %v1237 = vmin.f32 %v1080, %v1045
    %v1238 = vmin.f32 %v1085, %v1046
    %v1239 = vmin.f32 %v1090, %v1047
    %v1240 = vmin.f32 %v1095, %v1048
    %v1241 = vmin.f32 %v1100, %v1049
    %v1242 = vmin.f32 %v1105, %v1050
    %v1243 = vmin.f32 %v1110, %v1051
    %v1244 = vmin.f32 %v1115, %v1052
    %v1245 = vmin.f32 %v1120, %v1053
    %v1246 = vmin.f32 %v1125, %v1054
    %v1247 = vmin.f32 %v1130, %v1055
    %v1248 = vmin.f32 %v1135, %v1056
    %v1249 = vmin.f32 %v1140, %v1057
    %v1250 = vmin.f32 %v1145, %v1058
    %v1251 = vmin.f32 %v1150, %v1059
    %v1252 = vmin.f32 %v1155, %v1060
    %v1253 = vmin.f32 %v1160, %v1061
    %v1254 = vmin.f32 %v1165, %v1062
    %v1255 = vmin.f32 %v1170, %v1063
    %v1256 = vmin.f32 %v1175, %v1064
    %v1257 = vmin.f32 %v1180, %v1065
    %v1258 = vmin.f32 %v1185, %v1066
    %v1259 = vmin.f32 %v1190, %v1067
    %v1260 = vmin.f32 %v1195, %v1068
    %v1261 = vmin.f32 %v1200, %v1069
    %v1262 = vmin.f32 %v1205, %v1070
    %v1263 = vmin.f32 %v1210, %v1071
    %v1264 = vmin.f32 %v1215, %v1072
    %v1265 = vmin.f32 %v1220, %v1073
    %v1266 = vmin.f32 %v1225, %v1074
    %v1267 = vmin.f32 %v1230, %v1075
    %v1268 = vmin.f32 %v1235, %v1076
    %v1269 = vsub.f32 %v62, %v1237
    %v1270 = vsub.f32 %v63, %v1238
    %v1271 = vsub.f32 %v64, %v1239
    %v1272 = vsub.f32 %v65, %v1240
    %v1273 = vsub.f32 %v66, %v1241
    %v1274 = vsub.f32 %v67, %v1242
    %v1275 = vsub.f32 %v68, %v1243
    %v1276 = vsub.f32 %v69, %v1244
    %v1277 = vsub.f32 %v70, %v1245
    %v1278 = vsub.f32 %v71, %v1246
    %v1279 = vsub.f32 %v72, %v1247
    %v1280 = vsub.f32 %v73, %v1248
    %v1281 = vsub.f32 %v74, %v1249
    %v1282 = vsub.f32 %v75, %v1250
    %v1283 = vsub.f32 %v76, %v1251
    %v1284 = vsub.f32 %v77, %v1252
    %v1285 = vsub.f32 %v78, %v1253
    %v1286 = vsub.f32 %v79, %v1254
    %v1287 = vsub.f32 %v80, %v1255
    %v1288 = vsub.f32 %v81, %v1256
    %v1289 = vsub.f32 %v82, %v1257
    %v1290 = vsub.f32 %v83, %v1258
    %v1291 = vsub.f32 %v84, %v1259
    %v1292 = vsub.f32 %v85, %v1260
    %v1293 = vsub.f32 %v86, %v1261
    %v1294 = vsub.f32 %v87, %v1262
    %v1295 = vsub.f32 %v88, %v1263
    %v1296 = vsub.f32 %v89, %v1264
    %v1297 = vsub.f32 %v90, %v1265
    %v1298 = vsub.f32 %v91, %v1266
    %v1299 = vsub.f32 %v92, %v1267
    %v1300 = vsub.f32 %v93, %v1268
    %1301 = vst.msk [vmem:[#allocation8] sm:$0xff] %vm126, %v1269
    %1302 = vst.msk [vmem:[#allocation8 + $0x8] sm:$0xff] %vm126, %v1270
    %1303 = vst.msk [vmem:[#allocation8 + $0x10] sm:$0xff] %vm126, %v1271
    %1304 = vst.msk [vmem:[#allocation8 + $0x18] sm:$0xff] %vm126, %v1272
    %1305 = vst.msk [vmem:[#allocation8 + $0x20] sm:$0xff] %vm126, %v1273
    %1306 = vst.msk [vmem:[#allocation8 + $0x28] sm:$0xff] %vm126, %v1274
    %1307 = vst.msk [vmem:[#allocation8 + $0x30] sm:$0xff] %vm126, %v1275
    %1308 = vst.msk [vmem:[#allocation8 + $0x38] sm:$0xff] %vm126, %v1276
    %1309 = vst.msk [vmem:[#allocation8 + $0x40] sm:$0xff] %vm126, %v1277
    %1310 = vst.msk [vmem:[#allocation8 + $0x48] sm:$0xff] %vm126, %v1278
    %1311 = vst.msk [vmem:[#allocation8 + $0x50] sm:$0xff] %vm126, %v1279
    %1312 = vst.msk [vmem:[#allocation8 + $0x58] sm:$0xff] %vm126, %v1280
    %1313 = vst.msk [vmem:[#allocation8 + $0x60] sm:$0xff] %vm126, %v1281
    %1314 = vst.msk [vmem:[#allocation8 + $0x68] sm:$0xff] %vm126, %v1282
    %1315 = vst.msk [vmem:[#allocation8 + $0x70] sm:$0xff] %vm126, %v1283
    %1316 = vst.msk [vmem:[#allocation8 + $0x78] sm:$0xff] %vm126, %v1284
    %1317 = vst.msk [vmem:[#allocation8 + $0x80] sm:$0xff] %vm126, %v1285
    %1318 = vst.msk [vmem:[#allocation8 + $0x88] sm:$0xff] %vm126, %v1286
    %1319 = vst.msk [vmem:[#allocation8 + $0x90] sm:$0xff] %vm126, %v1287
    %1320 = vst.msk [vmem:[#allocation8 + $0x98] sm:$0xff] %vm126, %v1288
    %1321 = vst.msk [vmem:[#allocation8 + $0xa0] sm:$0xff] %vm126, %v1289
    %1322 = vst.msk [vmem:[#allocation8 + $0xa8] sm:$0xff] %vm126, %v1290
    %1323 = vst.msk [vmem:[#allocation8 + $0xb0] sm:$0xff] %vm126, %v1291
    %1324 = vst.msk [vmem:[#allocation8 + $0xb8] sm:$0xff] %vm126, %v1292
    %1325 = vst.msk [vmem:[#allocation8 + $0xc0] sm:$0xff] %vm126, %v1293
    %1326 = vst.msk [vmem:[#allocation8 + $0xc8] sm:$0xff] %vm126, %v1294
    %1327 = vst.msk [vmem:[#allocation8 + $0xd0] sm:$0xff] %vm126, %v1295
    %1328 = vst.msk [vmem:[#allocation8 + $0xd8] sm:$0xff] %vm126, %v1296
    %1329 = vst.msk [vmem:[#allocation8 + $0xe0] sm:$0xff] %vm126, %v1297
    %1330 = vst.msk [vmem:[#allocation8 + $0xe8] sm:$0xff] %vm126, %v1298
    %1331 = vst.msk [vmem:[#allocation8 + $0xf0] sm:$0xff] %vm126, %v1299
    %1332 = vst.msk [vmem:[#allocation8 + $0xf8] sm:$0xff] %vm126, %v1300
    // Predicated region
    $region34: #{tpu_custom_call.1} parent=1 // pred_check
      _
    $region35: #{tpu_custom_call.1} parent=1 // pred_check_branch
      %1334 = sbr.rel (0) target = $region37
    $region36: #{tpu_custom_call.1} parent=1 // pred_region
      %s1336 = ssub.s32 4096, 4096
      %1337 = vsyncadd [#allocation4], %s1336
      %s1338 = sshll.u32 [#allocation8], 4
      %s1339 = int_to_ptr.vmem [resolvable:$true] %s1338
      %1344 = dma.vmem_to_hbm [thread:$0]  %s1339, 4096, %s5, [#allocation4], 128, 128, 8
    $region37: #{tpu_custom_call.1} parent=1 // pred_fallthru
      _
    // Predicated region
    $region38: #{tpu_custom_call.1} parent=1 // pred_check
      _
    $region39: #{tpu_custom_call.1} parent=1 // pred_check_branch
      %1346 = sbr.rel (0) target = $region41
    $region40: #{tpu_custom_call.1} parent=1 // pred_region
      %1347 = dma.done [#allocation4], 4096
    $region41: #{tpu_custom_call.1} parent=1 // pred_fallthru
      _
    %1348 = vsyncpa [#allocation3], 1
    %1349 = vsyncpa [#allocation6], 1
    %1350 = vsyncpa [#allocation4], 1

</llo_original>
